<compile_context>
chip_gen: v5e
topology: v5e:2x2
jax: 0.10.0
libtpu: 0.0.40
codegen_flags: <defaults>
</compile_context>

<pallas_src>
import functools

import jax
import jax.numpy as jnp
from jax.experimental import pallas as pl
from jax.experimental.pallas import tpu as pltpu


def _cdiv(a, b):
    return (a + b - 1) // b


def _round_up(a, b):
    return _cdiv(a, b) * b


def _mlp_kernel(x_ref, w1_ref, b1_ref, w2_ref, b2_ref, w3_ref, b3_ref, o_ref):
    # Fused 3-layer MLP, all f32 (each layer is a single MXU tile at these sizes).
    x = x_ref[...]                                                    # (block_b, in) f32
    h1 = jnp.dot(x, w1_ref[...], preferred_element_type=jnp.float32) + b1_ref[...]
    h1 = jnp.maximum(h1, 0.0)
    h2 = jnp.dot(h1, w2_ref[...], preferred_element_type=jnp.float32) + b2_ref[...]
    h2 = jnp.maximum(h2, 0.0)
    y = jnp.dot(h2, w3_ref[...], preferred_element_type=jnp.float32) + b3_ref[...]
    # bf16, 128-lane unmasked vst: half the HBM writeback of the old padded-f32 output.
    o_ref[...] = y.astype(o_ref.dtype)


@functools.partial(jax.jit, static_argnames=("block_b", "out_pad"))
def _forward_impl(x, w1, b1, w2, b2, w3, b3, *, block_b, out_pad):
    batch, in_size = x.shape
    hidden = w1.shape[1]
    out_size = w3.shape[1]

    x = x.astype(jnp.float32)
    w1 = w1.astype(jnp.float32)
    b1 = b1.astype(jnp.float32)
    w2 = w2.astype(jnp.float32)
    b2 = b2.astype(jnp.float32)

    # Pad only the tiny last-layer weights/bias to 128 output lanes (lane-dense store).
    w3p = jnp.zeros((hidden, out_pad), jnp.float32).at[:, :out_size].set(w3.astype(jnp.float32))
    b3p = jnp.zeros((1, out_pad), jnp.float32).at[:, :out_size].set(b3.astype(jnp.float32))

    grid = (pl.cdiv(batch, block_b),)   # ragged last block handled by Pallas OOB masking

    def full(a):  # tiny weights/biases: full-array block, resident across all grid steps
        return pl.BlockSpec(a.shape, lambda i: (0,) * a.ndim)

    # VMEM budget from the actual buffers (x / out double-buffered, weights small), + margin.
    param_bytes = 4 * (in_size * hidden + hidden + hidden * hidden + hidden
                       + hidden * out_pad + out_pad)
    vmem_bytes = (2 * block_b * in_size * 4          # x tiles (f32, double-buffered)
                  + 2 * block_b * out_pad * 2        # out tiles (bf16, double-buffered)
                  + 2 * param_bytes                  # weights/biases (be generous)
                  + (4 << 20))                       # compiler-internal scratch margin
    vmem_bytes = max(int(vmem_bytes), 16 << 20)      # well under every gen's physical VMEM

    cost = pl.CostEstimate(
        flops=2 * batch * (in_size * hidden + hidden * hidden + hidden * out_size),
        transcendentals=0,
        bytes_accessed=batch * in_size * 4 + batch * out_pad * 2 + param_bytes,
    )

    yp = pl.pallas_call(
        _mlp_kernel,
        out_shape=jax.ShapeDtypeStruct((batch, out_pad), jnp.bfloat16),
        grid_spec=pl.GridSpec(
            grid=grid,
            in_specs=[
                pl.BlockSpec((block_b, in_size), lambda i: (i, 0)),
                full(w1), full(b1), full(w2), full(b2), full(w3p), full(b3p),
            ],
            out_specs=pl.BlockSpec((block_b, out_pad), lambda i: (i, 0)),
        ),
        compiler_params=pltpu.CompilerParams(
            dimension_semantics=("parallel",),   # batch tiles shard across v7x's 2 TCs
            vmem_limit_bytes=vmem_bytes,
        ),
        cost_estimate=cost,
    )(x, w1, b1, w2, b2, w3p, b3p)

    # Slice off the padded lanes and restore f32; .detach() == stop_gradient (forward no-op).
    return jax.lax.stop_gradient(yp[:, :out_size].astype(jnp.float32))


def _choose_block_b(batch, max_block=4096):
    # 16-row alignment: f32 input tiles need 8 rows, the bf16 output tile packs 16 rows/vreg.
    align = 16
    if batch <= align:
        return align
    block = min(_round_up(batch, align), max_block)
    steps = _cdiv(batch, block)
    if steps < 2:
        steps = 2                       # give the second TensorCore work
    else:
        steps = _round_up(steps, 2)     # even step count -> balanced megacore split
    return _round_up(_cdiv(batch, steps), align)


def basic_dnn_forward(x, params, *, block_b=None):
    """params = (w1, b1, w2, b2, w3, b3); w_i shape (in, out), b_i shape (1, out)."""
    w1, b1, w2, b2, w3, b3 = params
    batch = x.shape[0]
    out_size = w3.shape[1]

    if block_b is None:
        block_b = _choose_block_b(batch)
    assert block_b % 16 == 0, "block_b must be a multiple of 16 (f32 in / bf16 out tiling)"

    out_pad = _round_up(max(out_size, 128), 128)
    return _forward_impl(x, w1, b1, w2, b2, w3, b3, block_b=block_b, out_pad=out_pad)


def init_params(key, input_size, output_size, hidden=12, dtype=jnp.float32):
    """Mimics PyTorch nn.Linear default init: U[-1/sqrt(fan_in), +1/sqrt(fan_in)].
    Weights stored pre-transposed as (in, out) so the kernel is plain x @ W + b."""
    def linear(k, fan_in, fan_out):
        kw, kb = jax.random.split(k)
        bound = 1.0 / jnp.sqrt(fan_in)
        w = jax.random.uniform(kw, (fan_in, fan_out), dtype, -bound, bound)
        b = jax.random.uniform(kb, (1, fan_out), dtype, -bound, bound)
        return w, b

    k1, k2, k3 = jax.random.split(key, 3)
    w1, b1 = linear(k1, input_size, hidden)
    w2, b2 = linear(k2, hidden, hidden)
    w3, b3 = linear(k3, hidden, output_size)
    return (w1, b1, w2, b2, w3, b3)


def reference_forward(x, params):
    """Pure-f32 JAX reference (same math as the PyTorch module)."""
    w1, b1, w2, b2, w3, b3 = params
    h1 = jnp.maximum(jnp.dot(x, w1, preferred_element_type=jnp.float32) + b1, 0.0)
    h2 = jnp.maximum(jnp.dot(h1, w2, preferred_element_type=jnp.float32) + b2, 0.0)
    return jnp.dot(h2, w3, preferred_element_type=jnp.float32) + b3


if __name__ == "__main__":
    input_size = 32
    output_size = 4
    batch = 50  # not a multiple of the 32-row tile -> exercises the ragged last block

    key = jax.random.PRNGKey(0)
    kx, kp = jax.random.split(key)

    x = jax.random.normal(kx, (batch, input_size), dtype=jnp.float32)
    params = init_params(kp, input_size, output_size)

    y = jax.block_until_ready(basic_dnn_forward(x, params))
    assert y.shape == (batch, output_size)
    assert y.dtype == jnp.float32

    # Compute is full f32; only the final HBM store is bf16-rounded (<= ~2^-8 relative).
    y_ref = reference_forward(x, params)
    assert jnp.allclose(y, y_ref, atol=2e-2, rtol=2e-2), "mismatch vs f32 reference"

    # TODO(synk): train()/Adam/MSELoss are training-time state and are intentionally not ported.
    print("KERNEL_OK")
</pallas_src>

<mosaic_0001>
module attributes {stable_mosaic.version = 11 : i64} {
  func.func @_mlp_kernel(%arg0: i32, %arg1: memref<32x32xf32, #tpu.memory_space<vmem>>, %arg2: memref<32x12xf32, #tpu.memory_space<vmem>>, %arg3: memref<1x12xf32, #tpu.memory_space<vmem>>, %arg4: memref<12x12xf32, #tpu.memory_space<vmem>>, %arg5: memref<1x12xf32, #tpu.memory_space<vmem>>, %arg6: memref<12x128xf32, #tpu.memory_space<vmem>>, %arg7: memref<1x128xf32, #tpu.memory_space<vmem>>, %arg8: memref<32x128xbf16, #tpu.memory_space<vmem>>) attributes {dimension_semantics = [#tpu.dimension_semantics<parallel>], iteration_bounds = array<i64: 2>, scalar_prefetch = 0 : i64, scratch_operands = 0 : i64, tpu.core_type = #tpu.core_type<tc>, window_params = [{transform_indices = @transform_0, window_bounds = array<i64: 32, 32>}, {pipeline_mode = #tpu.pipeline_mode<synchronous>, transform_indices = @transform_1, window_bounds = array<i64: 32, 12>}, {pipeline_mode = #tpu.pipeline_mode<synchronous>, transform_indices = @transform_2, window_bounds = array<i64: 1, 12>}, {pipeline_mode = #tpu.pipeline_mode<synchronous>, transform_indices = @transform_3, window_bounds = array<i64: 12, 12>}, {pipeline_mode = #tpu.pipeline_mode<synchronous>, transform_indices = @transform_4, window_bounds = array<i64: 1, 12>}, {pipeline_mode = #tpu.pipeline_mode<synchronous>, transform_indices = @transform_5, window_bounds = array<i64: 12, 128>}, {pipeline_mode = #tpu.pipeline_mode<synchronous>, transform_indices = @transform_6, window_bounds = array<i64: 1, 128>}, {transform_indices = @transform_7, window_bounds = array<i64: 32, 128>}]} {
    %c0 = arith.constant 0 : index
    %c0_0 = arith.constant 0 : index
    %0 = vector.load %arg1[%c0, %c0_0] : memref<32x32xf32, #tpu.memory_space<vmem>>, vector<32x32xf32>
    %c0_1 = arith.constant 0 : index
    %c0_2 = arith.constant 0 : index
    %1 = vector.load %arg2[%c0_1, %c0_2] : memref<32x12xf32, #tpu.memory_space<vmem>>, vector<32x12xf32>
    %cst = arith.constant dense<0.000000e+00> : vector<32x12xf32>
    %2 = tpu.matmul %0, %1, %cst {dimension_numbers = #tpu.dot_dimension_numbers<[1], [0], [0], [1], [0, 0, 1, 1], [], []>} : vector<32x32xf32>, vector<32x12xf32>, vector<32x12xf32> -> vector<32x12xf32>
    %c0_3 = arith.constant 0 : index
    %c0_4 = arith.constant 0 : index
    %3 = vector.load %arg3[%c0_3, %c0_4] : memref<1x12xf32, #tpu.memory_space<vmem>>, vector<1x12xf32>
    %4 = vector.broadcast %3 : vector<1x12xf32> to vector<32x12xf32>
    %5 = arith.addf %2, %4 : vector<32x12xf32>
    %cst_5 = arith.constant 0.000000e+00 : f32
    %6 = vector.broadcast %cst_5 : f32 to vector<32x12xf32>
    %7 = arith.maximumf %5, %6 : vector<32x12xf32>
    %c0_6 = arith.constant 0 : index
    %c0_7 = arith.constant 0 : index
    %8 = vector.load %arg4[%c0_6, %c0_7] : memref<12x12xf32, #tpu.memory_space<vmem>>, vector<12x12xf32>
    %cst_8 = arith.constant dense<0.000000e+00> : vector<32x12xf32>
    %9 = tpu.matmul %7, %8, %cst_8 {dimension_numbers = #tpu.dot_dimension_numbers<[1], [0], [0], [1], [0, 0, 1, 1], [], []>} : vector<32x12xf32>, vector<12x12xf32>, vector<32x12xf32> -> vector<32x12xf32>
    %c0_9 = arith.constant 0 : index
    %c0_10 = arith.constant 0 : index
    %10 = vector.load %arg5[%c0_9, %c0_10] : memref<1x12xf32, #tpu.memory_space<vmem>>, vector<1x12xf32>
    %11 = vector.broadcast %10 : vector<1x12xf32> to vector<32x12xf32>
    %12 = arith.addf %9, %11 : vector<32x12xf32>
    %cst_11 = arith.constant 0.000000e+00 : f32
    %13 = vector.broadcast %cst_11 : f32 to vector<32x12xf32>
    %14 = arith.maximumf %12, %13 : vector<32x12xf32>
    %c0_12 = arith.constant 0 : index
    %c0_13 = arith.constant 0 : index
    %15 = vector.load %arg6[%c0_12, %c0_13] : memref<12x128xf32, #tpu.memory_space<vmem>>, vector<12x128xf32>
    %cst_14 = arith.constant dense<0.000000e+00> : vector<32x128xf32>
    %16 = tpu.matmul %14, %15, %cst_14 {dimension_numbers = #tpu.dot_dimension_numbers<[1], [0], [0], [1], [0, 0, 1, 1], [], []>} : vector<32x12xf32>, vector<12x128xf32>, vector<32x128xf32> -> vector<32x128xf32>
    %c0_15 = arith.constant 0 : index
    %c0_16 = arith.constant 0 : index
    %17 = vector.load %arg7[%c0_15, %c0_16] : memref<1x128xf32, #tpu.memory_space<vmem>>, vector<1x128xf32>
    %18 = vector.broadcast %17 : vector<1x128xf32> to vector<32x128xf32>
    %19 = arith.addf %16, %18 : vector<32x128xf32>
    %20 = arith.truncf %19 : vector<32x128xf32> to vector<32x128xbf16>
    %c0_17 = arith.constant 0 : index
    %c0_18 = arith.constant 0 : index
    %21 = vector.load %arg8[%c0_17, %c0_18] : memref<32x128xbf16, #tpu.memory_space<vmem>>, vector<32x128xbf16>
    tpu.vector_store %arg8[%c0_17, %c0_18], %20 {strides = array<i32>} : memref<32x128xbf16, #tpu.memory_space<vmem>>, vector<32x128xbf16>,
    return
  }
  func.func @transform_0(%arg0: i32) -> (i32, i32) {
    %c0_i32 = arith.constant 0 : i32
    %c0_i32_0 = arith.constant 0 : i32
    return %arg0, %c0_i32 : i32, i32
  }
  func.func @transform_1(%arg0: i32) -> (i32, i32) {
    %c0_i32 = arith.constant 0 : i32
    %c0_i32_0 = arith.constant 0 : i32
    %c0_i32_1 = arith.constant 0 : i32
    return %c0_i32, %c0_i32_0 : i32, i32
  }
  func.func @transform_2(%arg0: i32) -> (i32, i32) {
    %c0_i32 = arith.constant 0 : i32
    %c0_i32_0 = arith.constant 0 : i32
    %c0_i32_1 = arith.constant 0 : i32
    return %c0_i32, %c0_i32_0 : i32, i32
  }
  func.func @transform_3(%arg0: i32) -> (i32, i32) {
    %c0_i32 = arith.constant 0 : i32
    %c0_i32_0 = arith.constant 0 : i32
    %c0_i32_1 = arith.constant 0 : i32
    return %c0_i32, %c0_i32_0 : i32, i32
  }
  func.func @transform_4(%arg0: i32) -> (i32, i32) {
    %c0_i32 = arith.constant 0 : i32
    %c0_i32_0 = arith.constant 0 : i32
    %c0_i32_1 = arith.constant 0 : i32
    return %c0_i32, %c0_i32_0 : i32, i32
  }
  func.func @transform_5(%arg0: i32) -> (i32, i32) {
    %c0_i32 = arith.constant 0 : i32
    %c0_i32_0 = arith.constant 0 : i32
    %c0_i32_1 = arith.constant 0 : i32
    return %c0_i32, %c0_i32_0 : i32, i32
  }
  func.func @transform_6(%arg0: i32) -> (i32, i32) {
    %c0_i32 = arith.constant 0 : i32
    %c0_i32_0 = arith.constant 0 : i32
    %c0_i32_1 = arith.constant 0 : i32
    return %c0_i32, %c0_i32_0 : i32, i32
  }
  func.func @transform_7(%arg0: i32) -> (i32, i32) {
    %c0_i32 = arith.constant 0 : i32
    %c0_i32_0 = arith.constant 0 : i32
    return %arg0, %c0_i32 : i32, i32
  }
}

</mosaic_0001>

<llo_original>
// kernel: _forward_impl.1
$region0: #{_forward_impl.1}
  #allocation0 [shape = 'u32[]', space=smem, size = 0x4, offset = 0x4, fixed_abs, tag = 'smem constant byte address 0x4 - core index']
  #allocation1 [shape = 'u32[72,128]{1,0:T(1,128)}', space=vmem, size = 0x9000, scoped, tag = 'internal scratch']
  %s0 = inlined_call_operand.vmem [shape: f32[50,32], index: 0, kind: input, shape index: {}]
  %s1 = inlined_call_operand.vmem [shape: f32[32,12], index: 1, kind: input, shape index: {}]
  %s2 = inlined_call_operand.vmem [shape: f32[1,12], index: 2, kind: input, shape index: {}]
  %s3 = inlined_call_operand.vmem [shape: f32[12,12], index: 3, kind: input, shape index: {}]
  %s4 = inlined_call_operand.vmem [shape: f32[1,12], index: 4, kind: input, shape index: {}]
  %s5 = inlined_call_operand.vmem [shape: f32[12,128], index: 5, kind: input, shape index: {}]
  %s6 = inlined_call_operand.vmem [shape: f32[1,128], index: 6, kind: input, shape index: {}]
  %s7 = inlined_call_operand.vmem [shape: bf16[50,128], index: 7, kind: output, shape index: {}]
  %s8 = sld [smem:[#allocation0]]
  $region105: #{_forward_impl.1} parent=0
    _
  %s10 = ssub.s32 1, %s8
  %s11 = scalar_select 0, %s10, %s8
  $region1: #{_forward_impl.1} parent=0
    #allocation2 [shape = 'u8[16384]{0}', space=vmem, size = 0x4000, scoped, tag = 'output window, operand 0']
    loop: start=0, step=1, limit=4
    $region2: #{_forward_impl.1} parent=1 // loop_pre_header
      _
    $region3: #{_forward_impl.1} parent=1 // loop_header
      %s13 = sphi 0, %s17
      %p14 = scmp.ge.s32.totalorder %s13, 4
      %s23 = sphi 0, %s25
      %s26 = sphi 0, %s23
      %s27 = sphi 0, %s26
      %s43 = sphi 0, %s27
      %s47 = sphi 0, %s47
      %s49 = sphi 0, %s47
      %s50 = sphi 0, %s49
      %s64 = sphi 0, %s50
      %s68 = sphi 0, %s68
      %s70 = sphi 0, %s68
      %s71 = sphi 0, %s70
      %s85 = sphi 0, %s71
      %s89 = sphi 0, %s89
      %s91 = sphi 0, %s89
      %s92 = sphi 0, %s91
      %s106 = sphi 0, %s92
      %s110 = sphi 0, %s110
      %s112 = sphi 0, %s110
      %s113 = sphi 0, %s112
      %s127 = sphi 0, %s113
      %s131 = sphi 0, %s131
      %s133 = sphi 0, %s131
      %s134 = sphi 0, %s133
      %s148 = sphi 0, %s134
      %s152 = sphi 0, %s152
      %s154 = sphi 0, %s152
      %s155 = sphi 0, %s154
      %s169 = sphi 0, %s155
      %s175 = sphi 0, %s177
      %s178 = sphi 0, %s175
      %s179 = sphi 0, %s178
      %s195 = sphi 0, %s179
    $region4: #{_forward_impl.1} parent=1 // loop_header_branch
      %16 = sbr.rel (%p14) target = $region8
    $region5: #{_forward_impl.1} parent=1 // loop_body
      %s18 = ssub.s32 %s13, 1
      %s19 = ssub.s32 %s13, 2
      %s20 = sadd.s32 %s13, 1
      %s21 = ssub.s32 %s13, %s20
      %p22 = scmp.eq.s32.totalorder %s21, 0
      %s24 = sadd.s32 %s23, 1
      %s25 = scalar_select %p22, %s23, %s24
      %p28 = pneg %p22
      %p29 = scmp.eq.s32.totalorder %s13, 1
      %p30 = por %p28, %p29
      %p31 = scmp.ne.s32.totalorder %s23, %s26
      %p32 = scmp.eq.s32.totalorder %s13, 0
      %p33 = por %p31, %p32
      %p34 = scmp.ne.s32.totalorder %s23, %s26
      %p35 = scmp.eq.s32.totalorder %s18, 1
      %p36 = por %p34, %p35
      %p37 = scmp.ne.s32.totalorder %s26, %s27
      %p38 = scmp.eq.s32.totalorder %s18, 0
      %p39 = por %p37, %p38
      %p40 = scmp.ne.s32.totalorder %s26, %s27
      %p41 = scmp.eq.s32.totalorder %s19, 1
      %p42 = por %p40, %p41
      %p44 = scmp.ne.s32.totalorder %s27, %s43
      %p45 = scmp.eq.s32.totalorder %s19, 0
      %p46 = por %p44, %p45
      %s48 = sadd.s32 %s47, 1
      %p51 = scmp.eq.s32.totalorder %s13, 1
      %p52 = scmp.ne.s32.totalorder %s47, %s49
      %p53 = scmp.eq.s32.totalorder %s13, 0
      %p54 = por %p52, %p53
      %p55 = scmp.ne.s32.totalorder %s47, %s49
      %p56 = scmp.eq.s32.totalorder %s18, 1
      %p57 = por %p55, %p56
      %p58 = scmp.ne.s32.totalorder %s49, %s50
      %p59 = scmp.eq.s32.totalorder %s18, 0
      %p60 = por %p58, %p59
      %p61 = scmp.ne.s32.totalorder %s49, %s50
      %p62 = scmp.eq.s32.totalorder %s19, 1
      %p63 = por %p61, %p62
      %p65 = scmp.ne.s32.totalorder %s50, %s64
      %p66 = scmp.eq.s32.totalorder %s19, 0
      %p67 = por %p65, %p66
      %s69 = sadd.s32 %s68, 1
      %p72 = scmp.eq.s32.totalorder %s13, 1
      %p73 = scmp.ne.s32.totalorder %s68, %s70
      %p74 = scmp.eq.s32.totalorder %s13, 0
      %p75 = por %p73, %p74
      %p76 = scmp.ne.s32.totalorder %s68, %s70
      %p77 = scmp.eq.s32.totalorder %s18, 1
      %p78 = por %p76, %p77
      %p79 = scmp.ne.s32.totalorder %s70, %s71
      %p80 = scmp.eq.s32.totalorder %s18, 0
      %p81 = por %p79, %p80
      %p82 = scmp.ne.s32.totalorder %s70, %s71
      %p83 = scmp.eq.s32.totalorder %s19, 1
      %p84 = por %p82, %p83
      %p86 = scmp.ne.s32.totalorder %s71, %s85
      %p87 = scmp.eq.s32.totalorder %s19, 0
      %p88 = por %p86, %p87
      %s90 = sadd.s32 %s89, 1
      %p93 = scmp.eq.s32.totalorder %s13, 1
      %p94 = scmp.ne.s32.totalorder %s89, %s91
      %p95 = scmp.eq.s32.totalorder %s13, 0
      %p96 = por %p94, %p95
      %p97 = scmp.ne.s32.totalorder %s89, %s91
      %p98 = scmp.eq.s32.totalorder %s18, 1
      %p99 = por %p97, %p98
      %p100 = scmp.ne.s32.totalorder %s91, %s92
      %p101 = scmp.eq.s32.totalorder %s18, 0
      %p102 = por %p100, %p101
      %p103 = scmp.ne.s32.totalorder %s91, %s92
      %p104 = scmp.eq.s32.totalorder %s19, 1
      %p105 = por %p103, %p104
      %p107 = scmp.ne.s32.totalorder %s92, %s106
      %p108 = scmp.eq.s32.totalorder %s19, 0
      %p109 = por %p107, %p108
      %s111 = sadd.s32 %s110, 1
      %p114 = scmp.eq.s32.totalorder %s13, 1
      %p115 = scmp.ne.s32.totalorder %s110, %s112
      %p116 = scmp.eq.s32.totalorder %s13, 0
      %p117 = por %p115, %p116
      %p118 = scmp.ne.s32.totalorder %s110, %s112
      %p119 = scmp.eq.s32.totalorder %s18, 1
      %p120 = por %p118, %p119
      %p121 = scmp.ne.s32.totalorder %s112, %s113
      %p122 = scmp.eq.s32.totalorder %s18, 0
      %p123 = por %p121, %p122
      %p124 = scmp.ne.s32.totalorder %s112, %s113
      %p125 = scmp.eq.s32.totalorder %s19, 1
      %p126 = por %p124, %p125
      %p128 = scmp.ne.s32.totalorder %s113, %s127
      %p129 = scmp.eq.s32.totalorder %s19, 0
      %p130 = por %p128, %p129
      %s132 = sadd.s32 %s131, 1
      %p135 = scmp.eq.s32.totalorder %s13, 1
      %p136 = scmp.ne.s32.totalorder %s131, %s133
      %p137 = scmp.eq.s32.totalorder %s13, 0
      %p138 = por %p136, %p137
      %p139 = scmp.ne.s32.totalorder %s131, %s133
      %p140 = scmp.eq.s32.totalorder %s18, 1
      %p141 = por %p139, %p140
      %p142 = scmp.ne.s32.totalorder %s133, %s134
      %p143 = scmp.eq.s32.totalorder %s18, 0
      %p144 = por %p142, %p143
      %p145 = scmp.ne.s32.totalorder %s133, %s134
      %p146 = scmp.eq.s32.totalorder %s19, 1
      %p147 = por %p145, %p146
      %p149 = scmp.ne.s32.totalorder %s134, %s148
      %p150 = scmp.eq.s32.totalorder %s19, 0
      %p151 = por %p149, %p150
      %s153 = sadd.s32 %s152, 1
      %p156 = scmp.eq.s32.totalorder %s13, 1
      %p157 = scmp.ne.s32.totalorder %s152, %s154
      %p158 = scmp.eq.s32.totalorder %s13, 0
      %p159 = por %p157, %p158
      %p160 = scmp.ne.s32.totalorder %s152, %s154
      %p161 = scmp.eq.s32.totalorder %s18, 1
      %p162 = por %p160, %p161
      %p163 = scmp.ne.s32.totalorder %s154, %s155
      %p164 = scmp.eq.s32.totalorder %s18, 0
      %p165 = por %p163, %p164
      %p166 = scmp.ne.s32.totalorder %s154, %s155
      %p167 = scmp.eq.s32.totalorder %s19, 1
      %p168 = por %p166, %p167
      %p170 = scmp.ne.s32.totalorder %s155, %s169
      %p171 = scmp.eq.s32.totalorder %s19, 0
      %p172 = por %p170, %p171
      %s173 = ssub.s32 %s13, %s20
      %p174 = scmp.eq.s32.totalorder %s173, 0
      %s176 = sadd.s32 %s175, 1
      %s177 = scalar_select %p174, %s175, %s176
      %p180 = pneg %p174
      %p181 = scmp.eq.s32.totalorder %s13, 1
      %p182 = por %p180, %p181
      %p183 = scmp.ne.s32.totalorder %s175, %s178
      %p184 = scmp.eq.s32.totalorder %s13, 0
      %p185 = por %p183, %p184
      %p186 = scmp.ne.s32.totalorder %s175, %s178
      %p187 = scmp.eq.s32.totalorder %s18, 1
      %p188 = por %p186, %p187
      %p189 = scmp.ne.s32.totalorder %s178, %s179
      %p190 = scmp.eq.s32.totalorder %s18, 0
      %p191 = por %p189, %p190
      %p192 = scmp.ne.s32.totalorder %s178, %s179
      %p193 = scmp.eq.s32.totalorder %s19, 1
      %p194 = por %p192, %p193
      %p196 = scmp.ne.s32.totalorder %s179, %s195
      %p197 = scmp.eq.s32.totalorder %s19, 0
      %p198 = por %p196, %p197
      %p199 = scmp.le.s32.totalorder 1, %s13
      %p200 = scmp.lt.s32.totalorder %s13, 3
      %p201 = pnand %p199, %p200
      %p202 = pneg %p201
      // Predicated region
      $region9: #{_forward_impl.1} parent=5 // pred_check
        _
      $region10: #{_forward_impl.1} parent=5 // pred_check_branch
        %204 = sbr.rel (%p201) target = $region12
      $region11: #{_forward_impl.1} parent=5 // pred_region
        %s205 = ssub.s32 %s13, 1
        // Predicated region
        $region13: #{_forward_impl.1} parent=11 // pred_check
          %p206 = pneg %p60
        $region14: #{_forward_impl.1} parent=11 // pred_check_branch
          %208 = sbr.rel (%p206) target = $region16
        $region15: #{_forward_impl.1} parent=11 // pred_region
          _
        $region16: #{_forward_impl.1} parent=11 // pred_fallthru
          _
        // Predicated region
        $region17: #{_forward_impl.1} parent=11 // pred_check
          %p209 = pneg %p81
        $region18: #{_forward_impl.1} parent=11 // pred_check_branch
          %211 = sbr.rel (%p209) target = $region20
        $region19: #{_forward_impl.1} parent=11 // pred_region
          _
        $region20: #{_forward_impl.1} parent=11 // pred_fallthru
          _
        // Predicated region
        $region21: #{_forward_impl.1} parent=11 // pred_check
          %p212 = pneg %p102
        $region22: #{_forward_impl.1} parent=11 // pred_check_branch
          %214 = sbr.rel (%p212) target = $region24
        $region23: #{_forward_impl.1} parent=11 // pred_region
          _
        $region24: #{_forward_impl.1} parent=11 // pred_fallthru
          _
        // Predicated region
        $region25: #{_forward_impl.1} parent=11 // pred_check
          %p215 = pneg %p123
        $region26: #{_forward_impl.1} parent=11 // pred_check_branch
          %217 = sbr.rel (%p215) target = $region28
        $region27: #{_forward_impl.1} parent=11 // pred_region
          _
        $region28: #{_forward_impl.1} parent=11 // pred_fallthru
          _
        // Predicated region
        $region29: #{_forward_impl.1} parent=11 // pred_check
          %p218 = pneg %p144
        $region30: #{_forward_impl.1} parent=11 // pred_check_branch
          %220 = sbr.rel (%p218) target = $region32
        $region31: #{_forward_impl.1} parent=11 // pred_region
          _
        $region32: #{_forward_impl.1} parent=11 // pred_fallthru
          _
        // Predicated region
        $region33: #{_forward_impl.1} parent=11 // pred_check
          %p221 = pneg %p165
        $region34: #{_forward_impl.1} parent=11 // pred_check_branch
          %223 = sbr.rel (%p221) target = $region36
        $region35: #{_forward_impl.1} parent=11 // pred_region
          _
        $region36: #{_forward_impl.1} parent=11 // pred_fallthru
          _
      $region12: #{_forward_impl.1} parent=5 // pred_fallthru
        _
      %p224 = scmp.lt.s32.totalorder %s13, 2
      // Predicated region
      $region37: #{_forward_impl.1} parent=5 // pred_check
        %p225 = pneg %p224
      $region38: #{_forward_impl.1} parent=5 // pred_check_branch
        %227 = sbr.rel (%p225) target = $region40
      $region39: #{_forward_impl.1} parent=5 // pred_region
        // Predicated region
        $region41: #{_forward_impl.1} parent=39 // pred_check
          %p228 = pneg %p33
        $region42: #{_forward_impl.1} parent=39 // pred_check_branch
          %230 = sbr.rel (%p228) target = $region44
        $region43: #{_forward_impl.1} parent=39 // pred_region
          %s231 = smul.u32 4, %s13
          %s232 = ssub.s32 7, %s231
          %p233 = scmp.lt.s32.totalorder %s232, 4
          %s234 = scalar_select %p233, %s232, 4
          %s235 = smul.u32 8, %s234
          %p236 = scmp.lt.s32.totalorder %s231, 6
          %s237 = scalar_select %p236, %s231, 6
          %s238 = smul.addr %s237, 8
          %s239 = scalar_lea.vmem %s0, %s238
          %s240 = smul.u32 4, %s13
          %s241 = ssub.s32 7, %s240
          %p242 = scmp.lt.s32.totalorder %s241, 4
          %s243 = scalar_select %p242, %s241, 4
          %s244 = smul.u32 8, %s243
        $region44: #{_forward_impl.1} parent=39 // pred_fallthru
          _
      $region40: #{_forward_impl.1} parent=5 // pred_fallthru
        _
      %p245 = scmp.le.s32.totalorder 1, %s13
      %p246 = scmp.lt.s32.totalorder %s13, 3
      %p247 = pnand %p245, %p246
      %p248 = pneg %p247
      // Predicated region
      $region45: #{_forward_impl.1} parent=5 // pred_check
        _
      $region46: #{_forward_impl.1} parent=5 // pred_check_branch
        %250 = sbr.rel (%p247) target = $region48
      $region47: #{_forward_impl.1} parent=5 // pred_region
        %s251 = ssub.s32 %s13, 1
        %s252 = smul.u32 4, %s18
        %s253 = ssub.s32 7, %s252
        %p254 = scmp.lt.s32.totalorder %s253, 4
        %s255 = scalar_select %p254, %s253, 4
        %s256 = smul.u32 8, %s255
        %p257 = scmp.lt.s32.totalorder %s252, 6
        %s258 = scalar_select %p257, %s252, 6
        %s259 = smul.addr %s258, 8
        %s260 = scalar_lea.vmem %s0, %s259
        %p261 = pneg %p39
        %p262 = pneg %p36
        %p263 = pneg %p60
        %p264 = pneg %p57
        %p265 = pneg %p81
        %p266 = pneg %p78
        %p267 = pneg %p102
        %p268 = pneg %p99
        %p269 = pneg %p123
        %p270 = pneg %p120
        %p271 = pneg %p144
        %p272 = pneg %p141
        %p273 = pneg %p165
        %p274 = pneg %p162
        %p275 = pneg %p191
        %p276 = pneg %p188
        %s277 = sand.u32 %s178, 1
        %s278 = sand.u32 %s178, 1
        %s279 = smul.addr %s278, 16
        %s280 = scalar_lea.vmem [#allocation2], %s279
        %s281 = smul.u32 4, %s18
        %s282 = ssub.s32 7, %s281
        %p283 = scmp.lt.s32.totalorder %s282, 4
        %s284 = scalar_select %p283, %s282, 4
        %s285 = smul.u32 8, %s284
        %p286 = scmp.lt.s32.totalorder %s281, 6
        %s287 = scalar_select %p286, %s281, 6
        %s288 = smul.addr %s287, 8
        %s289 = scalar_lea.vmem %s0, %s288
        %s290 = smul.u32 4, %s18
        %s291 = ssub.s32 7, %s290
        %p292 = scmp.lt.s32.totalorder %s291, 4
        %s293 = scalar_select %p292, %s291, 4
        %s294 = smul.u32 8, %s293
        %s295 = smul.u32 4, %s18
        %s296 = ssub.s32 7, %s295
        %p297 = scmp.lt.s32.totalorder %s296, 4
        %s298 = scalar_select %p297, %s296, 4
        %s299 = smul.u32 4, %s298
        %v300 = vld [vmem:[%s289] sm:$0xff]
        %v301 = vld [vmem:[%s289 + $0x8] sm:$0xff]
        %v302 = vld [vmem:[%s289 + $0x10] sm:$0xff]
        %v303 = vld [vmem:[%s289 + $0x18] sm:$0xff]
        %v304 = vld [vmem:[%s1] sm:$0xff]
        %v305 = vld [vmem:[%s1 + $0x8] sm:$0xff]
        %v306 = vld [vmem:[%s1 + $0x10] sm:$0xff]
        %v307 = vld [vmem:[%s1 + $0x18] sm:$0xff]
        %v308 = vld [vmem:[%s2] sm:$0x1]
        %v310 = vperm.slane %v308, 0
        %vm312 = vcmask 261120
        %v314 = vsel %vm312, %v300, 0
        %v317 = vsel %vm312, %v301, 0
        %v320 = vsel %vm312, %v302, 0
        %v323 = vsel %vm312, %v303, 0
        %325 = vmatpush.msra.mxu0 0.0
        %326 = vmatpush.msra.mxu0 0.0
        %327 = vmatpush.msra.mxu0 0.0
        %328 = vmatpush.msra.mxu0 0.0
        %329 = vmatpush.msra.mxu0 0.0
        %330 = vmatpush.msra.mxu0 0.0
        %331 = vmatpush.msra.mxu0 0.0
        %332 = vmatpush.msra.mxu0 0.0
        %333 = vmatpush.msra.mxu0 0.0
        %334 = vmatpush.msra.mxu0 0.0
        %335 = vmatpush.msra.mxu0 0.0
        %336 = vmatpush.msra.mxu0 0.0
        %337 = vmatpush.msra.mxu0 %v307
        %338 = vmatpush.msra.mxu0 %v306
        %339 = vmatpush.msra.mxu0 %v305
        %340 = vmatpush.msra.mxu0 %v304
        %341 = vmatmul.f32.gmra.mxu0 %v314
        %v342 = vpop.f32.mrf.mxu0
        %v343 = vadd.f32 %v310, %v342
        %344 = vmatmul.f32.gmra.mxu0 %v317
        %v345 = vpop.f32.mrf.mxu0
        %v346 = vadd.f32 %v310, %v345
        %347 = vmatmul.f32.gmra.mxu0 %v320
        %v348 = vpop.f32.mrf.mxu0
        %v349 = vadd.f32 %v310, %v348
        %350 = vmatmul.f32.gmra.mxu0 %v323
        %v351 = vpop.f32.mrf.mxu0
        %v352 = vadd.f32 %v310, %v351
        %353 = vdwg.mxu0
        %v354 = vmax.f32 %v343, 0.0
        %v355 = vmax.f32 %v346, 0.0
        %v356 = vmax.f32 %v349, 0.0
        %v357 = vmax.f32 %v352, 0.0
        %v358 = vld [vmem:[%s3] sm:$0xff]
        %v359 = vld [vmem:[%s3 + $0x8] sm:$0xf]
        %v360 = vld [vmem:[%s4] sm:$0x1]
        %v362 = vperm.slane %v360, 0
        %vm364 = vcmask 97280
        %v366 = vsel %vm364, %v354, 0
        %v369 = vsel %vm364, %v355, 0
        %v372 = vsel %vm364, %v356, 0
        %v375 = vsel %vm364, %v357, 0
        %vm377 = vcmask 1043456
        %v379 = vsel %vm377, %v359, 0
        %381 = vmatpush.msra.mxu0 0.0
        %382 = vmatpush.msra.mxu0 0.0
        %383 = vmatpush.msra.mxu0 0.0
        %384 = vmatpush.msra.mxu0 0.0
        %385 = vmatpush.msra.mxu0 0.0
        %386 = vmatpush.msra.mxu0 0.0
        %387 = vmatpush.msra.mxu0 0.0
        %388 = vmatpush.msra.mxu0 0.0
        %389 = vmatpush.msra.mxu0 0.0
        %390 = vmatpush.msra.mxu0 0.0
        %391 = vmatpush.msra.mxu0 0.0
        %392 = vmatpush.msra.mxu0 0.0
        %393 = vmatpush.msra.mxu0 0.0
        %394 = vmatpush.msra.mxu0 0.0
        %395 = vmatpush.msra.mxu0 %v379
        %396 = vmatpush.msra.mxu0 %v358
        %397 = vmatmul.f32.gmra.mxu0 %v366
        %v398 = vpop.f32.mrf.mxu0
        %v399 = vadd.f32 %v362, %v398
        %400 = vmatmul.f32.gmra.mxu0 %v369
        %v401 = vpop.f32.mrf.mxu0
        %v402 = vadd.f32 %v362, %v401
        %403 = vmatmul.f32.gmra.mxu0 %v372
        %v404 = vpop.f32.mrf.mxu0
        %v405 = vadd.f32 %v362, %v404
        %406 = vmatmul.f32.gmra.mxu0 %v375
        %v407 = vpop.f32.mrf.mxu0
        %v408 = vadd.f32 %v362, %v407
        %409 = vdwg.mxu0
        %v410 = vmax.f32 %v399, 0.0
        %v411 = vmax.f32 %v402, 0.0
        %v412 = vmax.f32 %v405, 0.0
        %v413 = vmax.f32 %v408, 0.0
        %v414 = vld [vmem:[%s5] sm:$0xff]
        %v415 = vld [vmem:[%s5 + $0x8] sm:$0xf]
        %v416 = vld [vmem:[%s6] sm:$0x1]
        %v418 = vperm.slane %v416, 0
        %v421 = vsel %vm364, %v410, 0
        %v424 = vsel %vm364, %v411, 0
        %v427 = vsel %vm364, %v412, 0
        %v430 = vsel %vm364, %v413, 0
        %v433 = vsel %vm377, %v415, 0
        %435 = vmatpush.msra.mxu0 0.0
        %436 = vmatpush.msra.mxu0 0.0
        %437 = vmatpush.msra.mxu0 0.0
        %438 = vmatpush.msra.mxu0 0.0
        %439 = vmatpush.msra.mxu0 0.0
        %440 = vmatpush.msra.mxu0 0.0
        %441 = vmatpush.msra.mxu0 0.0
        %442 = vmatpush.msra.mxu0 0.0
        %443 = vmatpush.msra.mxu0 0.0
        %444 = vmatpush.msra.mxu0 0.0
        %445 = vmatpush.msra.mxu0 0.0
        %446 = vmatpush.msra.mxu0 0.0
        %447 = vmatpush.msra.mxu0 0.0
        %448 = vmatpush.msra.mxu0 0.0
        %449 = vmatpush.msra.mxu0 %v433
        %450 = vmatpush.msra.mxu0 %v414
        %451 = vmatmul.f32.gmra.mxu0 %v421
        %v452 = vpop.f32.mrf.mxu0
        %v453 = vadd.f32 %v418, %v452
        %454 = vmatmul.f32.gmra.mxu0 %v424
        %v455 = vpop.f32.mrf.mxu0
        %v456 = vadd.f32 %v418, %v455
        %457 = vmatmul.f32.gmra.mxu0 %v427
        %v458 = vpop.f32.mrf.mxu0
        %v459 = vadd.f32 %v418, %v458
        %460 = vmatmul.f32.gmra.mxu0 %v430
        %v461 = vpop.f32.mrf.mxu0
        %v462 = vadd.f32 %v418, %v461
        %463 = vdwg.mxu0
        %v464 = vpack.c.bf16 %v453, %v453
        %v465 = vpack.c.bf16 %v456, %v456
        %v466 = vpack.c.bf16 %v459, %v459
        %v467 = vpack.c.bf16 %v462, %v462
        %468 = vst [vmem:[%s280] sm:$0xf] %v464
        %469 = vst [vmem:[%s280 + $0x4] sm:$0xf] %v465
        %470 = vst [vmem:[%s280 + $0x8] sm:$0xf] %v466
        %471 = vst [vmem:[%s280 + $0xc] sm:$0xf] %v467
        %s472 = sand.u32 %s178, 1
        %s473 = sand.u32 %s178, 1
        %s474 = smul.addr %s473, 16
        %s475 = scalar_lea.vmem [#allocation2], %s474
        // Predicated region
        $region49: #{_forward_impl.1} parent=47 // pred_check
          %p476 = pneg %p188
        $region50: #{_forward_impl.1} parent=47 // pred_check_branch
          %478 = sbr.rel (%p476) target = $region52
        $region51: #{_forward_impl.1} parent=47 // pred_region
          %s479 = smul.u32 4, %s18
          %s480 = ssub.s32 7, %s479
          %p481 = scmp.lt.s32.totalorder %s480, 4
          %s482 = scalar_select %p481, %s480, 4
          %s483 = smul.u32 4, %s482
          %p484 = scmp.ne.s32.totalorder 0, %s483
          %s485 = smul.addr %s479, 4
          %s486 = scalar_lea.vmem %s7, %s485
          // Predicated region
          $region53: #{_forward_impl.1} parent=51 // pred_check
            %p487 = pneg %p484
          $region54: #{_forward_impl.1} parent=51 // pred_check_branch
            %489 = sbr.rel (%p487) target = $region56
          $region55: #{_forward_impl.1} parent=51 // pred_region
            // Predicated region
            $region57: #{_forward_impl.1} parent=55 // pred_check
              _
            $region58: #{_forward_impl.1} parent=55 // pred_check_branch
              %491 = sbr.rel target = $region60
            $region59: #{_forward_impl.1} parent=55 // pred_region
              // Predicated region
              $region79: #{_forward_impl.1} parent=59 // pred_check
                _
              $region80: #{_forward_impl.1} parent=59 // pred_check_branch
                %547 = sbr.rel (0) target = $region82
              $region81: #{_forward_impl.1} parent=59 // pred_region
                %s549 = ssub.s32 16, 1
                %s550 = sshrl.u32 %s482, 2
                // While loop
                $region83: #{_forward_impl.1} parent=81 // loop_pre_header
                  _
                $region84: #{_forward_impl.1} parent=81 // loop_header
                  %s552 = sphi 0, %s554
                  %p553 = scmp.ge.s32.totalorder %s552, %s550
                  %s557 = sphi 0, %s570
                  %s558 = sphi %s475, %s573
                  %s559 = sphi %s486, %s574
                $region85: #{_forward_impl.1} parent=81 // loop_header_branch
                  %556 = sbr.rel (%p553) target = $region89
                $region86: #{_forward_impl.1} parent=81 // loop_body
                  %v560 = vld [vmem:[%s558] sm:%s549]
                  %561 = vst [vmem:[%s559] sm:%s549] %v560
                  %v562 = vld [vmem:[%s558 + $0x4] sm:%s549]
                  %563 = vst [vmem:[%s559 + $0x4] sm:%s549] %v562
                  %v564 = vld [vmem:[%s558 + $0x8] sm:%s549]
                  %565 = vst [vmem:[%s559 + $0x8] sm:%s549] %v564
                  %v566 = vld [vmem:[%s558 + $0xc] sm:%s549]
                  %567 = vst [vmem:[%s559 + $0xc] sm:%s549] %v566
                  %s568 = sadd.s32 1, %s557
                  %p569 = scmp.ge.s32.totalorder %s568, %s550
                  %s570 = scalar_select %p569, 0, %s568
                  %s571 = smul.u32 %s570, 16
                  %s572 = smul.u32 %s570, 16
                  %s573 = scalar_lea.vmem %s475, %s571 [#allocation2]
                  %s574 = scalar_lea.vmem %s486, %s572
                $region87: #{_forward_impl.1} parent=81 // loop_footer
                  %s554 = sadd.s32 %s552, 1
                $region88: #{_forward_impl.1} parent=81 // loop_footer_branch
                  %551 = sbr.rel target = $region84
                $region89: #{_forward_impl.1} parent=81 // loop_exit
                  _
                %s575 = sshrl.u32 %s482, 2
                %s576 = sand.u32 %s482, 3
                %s577 = smul.u32 %s575, 4
                %s578 = smul.u32 4, %s577
                %s579 = scalar_lea.vmem %s475, %s578 [#allocation2]
                %s580 = smul.u32 4, %s577
                %s581 = scalar_lea.vmem %s486, %s580
                // While loop
                $region90: #{_forward_impl.1} parent=81 // loop_pre_header
                  _
                $region91: #{_forward_impl.1} parent=81 // loop_header
                  %s583 = sphi 0, %s585
                  %p584 = scmp.ge.s32.totalorder %s583, %s576
                  %s588 = sphi 0, %s595
                  %s589 = sphi %s579, %s598
                  %s590 = sphi %s581, %s599
                $region92: #{_forward_impl.1} parent=81 // loop_header_branch
                  %587 = sbr.rel (%p584) target = $region96
                $region93: #{_forward_impl.1} parent=81 // loop_body
                  %v591 = vld [vmem:[%s589] sm:%s549]
                  %592 = vst [vmem:[%s590] sm:%s549] %v591
                  %s593 = sadd.s32 1, %s588
                  %p594 = scmp.ge.s32.totalorder %s593, %s576
                  %s595 = scalar_select %p594, 0, %s593
                  %s596 = smul.u32 %s595, 4
                  %s597 = smul.u32 %s595, 4
                  %s598 = scalar_lea.vmem %s579, %s596 [#allocation2]
                  %s599 = scalar_lea.vmem %s581, %s597
                $region94: #{_forward_impl.1} parent=81 // loop_footer
                  %s585 = sadd.s32 %s583, 1
                $region95: #{_forward_impl.1} parent=81 // loop_footer_branch
                  %582 = sbr.rel target = $region91
                $region96: #{_forward_impl.1} parent=81 // loop_exit
                  _
              $region82: #{_forward_impl.1} parent=59 // pred_fallthru
                _
            $region60: #{_forward_impl.1} parent=55 // pred_fallthru
              _
            // Predicated region
            $region61: #{_forward_impl.1} parent=55 // pred_check
              _
            $region62: #{_forward_impl.1} parent=55 // pred_check_branch
              %493 = sbr.rel (0) target = $region64
            $region63: #{_forward_impl.1} parent=55 // pred_region
              %s495 = ssub.s32 16, 1
              %s496 = sshrl.u32 %s482, 2
              // While loop
              $region65: #{_forward_impl.1} parent=63 // loop_pre_header
                _
              $region66: #{_forward_impl.1} parent=63 // loop_header
                %s498 = sphi 0, %s500
                %p499 = scmp.ge.s32.totalorder %s498, %s496
                %s503 = sphi 0, %s516
                %s504 = sphi %s475, %s519
                %s505 = sphi %s486, %s520
              $region67: #{_forward_impl.1} parent=63 // loop_header_branch
                %502 = sbr.rel (%p499) target = $region71
              $region68: #{_forward_impl.1} parent=63 // loop_body
                %v506 = vld [vmem:[%s504] sm:%s495]
                %507 = vst [vmem:[%s505] sm:%s495] %v506
                %v508 = vld [vmem:[%s504 + $0x4] sm:%s495]
                %509 = vst [vmem:[%s505 + $0x4] sm:%s495] %v508
                %v510 = vld [vmem:[%s504 + $0x8] sm:%s495]
                %511 = vst [vmem:[%s505 + $0x8] sm:%s495] %v510
                %v512 = vld [vmem:[%s504 + $0xc] sm:%s495]
                %513 = vst [vmem:[%s505 + $0xc] sm:%s495] %v512
                %s514 = sadd.s32 1, %s503
                %p515 = scmp.ge.s32.totalorder %s514, %s496
                %s516 = scalar_select %p515, 0, %s514
                %s517 = smul.u32 %s516, 16
                %s518 = smul.u32 %s516, 16
                %s519 = scalar_lea.vmem %s475, %s517 [#allocation2]
                %s520 = scalar_lea.vmem %s486, %s518
              $region69: #{_forward_impl.1} parent=63 // loop_footer
                %s500 = sadd.s32 %s498, 1
              $region70: #{_forward_impl.1} parent=63 // loop_footer_branch
                %497 = sbr.rel target = $region66
              $region71: #{_forward_impl.1} parent=63 // loop_exit
                _
              %s521 = sshrl.u32 %s482, 2
              %s522 = sand.u32 %s482, 3
              %s523 = smul.u32 %s521, 4
              %s524 = smul.u32 4, %s523
              %s525 = scalar_lea.vmem %s475, %s524 [#allocation2]
              %s526 = smul.u32 4, %s523
              %s527 = scalar_lea.vmem %s486, %s526
              // While loop
              $region72: #{_forward_impl.1} parent=63 // loop_pre_header
                _
              $region73: #{_forward_impl.1} parent=63 // loop_header
                %s529 = sphi 0, %s531
                %p530 = scmp.ge.s32.totalorder %s529, %s522
                %s534 = sphi 0, %s541
                %s535 = sphi %s525, %s544
                %s536 = sphi %s527, %s545
              $region74: #{_forward_impl.1} parent=63 // loop_header_branch
                %533 = sbr.rel (%p530) target = $region78
              $region75: #{_forward_impl.1} parent=63 // loop_body
                %v537 = vld [vmem:[%s535] sm:%s495]
                %538 = vst [vmem:[%s536] sm:%s495] %v537
                %s539 = sadd.s32 1, %s534
                %p540 = scmp.ge.s32.totalorder %s539, %s522
                %s541 = scalar_select %p540, 0, %s539
                %s542 = smul.u32 %s541, 4
                %s543 = smul.u32 %s541, 4
                %s544 = scalar_lea.vmem %s525, %s542 [#allocation2]
                %s545 = scalar_lea.vmem %s527, %s543
              $region76: #{_forward_impl.1} parent=63 // loop_footer
                %s531 = sadd.s32 %s529, 1
              $region77: #{_forward_impl.1} parent=63 // loop_footer_branch
                %528 = sbr.rel target = $region73
              $region78: #{_forward_impl.1} parent=63 // loop_exit
                _
            $region64: #{_forward_impl.1} parent=55 // pred_fallthru
              _
          $region56: #{_forward_impl.1} parent=51 // pred_fallthru
            _
          %600 = vnop
        $region52: #{_forward_impl.1} parent=47 // pred_fallthru
          _
      $region48: #{_forward_impl.1} parent=5 // pred_fallthru
        _
      %p601 = scmp.le.s32.totalorder 2, %s13
      // Predicated region
      $region97: #{_forward_impl.1} parent=5 // pred_check
        %p602 = pneg %p601
      $region98: #{_forward_impl.1} parent=5 // pred_check_branch
        %604 = sbr.rel (%p602) target = $region100
      $region99: #{_forward_impl.1} parent=5 // pred_region
        %s605 = ssub.s32 %s13, 2
        // Predicated region
        $region101: #{_forward_impl.1} parent=99 // pred_check
          %p606 = pneg %p194
        $region102: #{_forward_impl.1} parent=99 // pred_check_branch
          %608 = sbr.rel (%p606) target = $region104
        $region103: #{_forward_impl.1} parent=99 // pred_region
          %s609 = sand.u32 %s179, 1
          %s610 = sand.u32 %s179, 1
          %s611 = smul.addr %s610, 16
          %s612 = scalar_lea.vmem [#allocation2], %s611
        $region104: #{_forward_impl.1} parent=99 // pred_fallthru
          _
      $region100: #{_forward_impl.1} parent=5 // pred_fallthru
        _
    $region6: #{_forward_impl.1} parent=1 // loop_footer
      %s17 = sadd.s32 1, %s13
    $region7: #{_forward_impl.1} parent=1 // loop_footer_branch
      %12 = sbr.rel target = $region3
    $region8: #{_forward_impl.1} parent=1 // loop_exit
      _

</llo_original>
